<compile_context>
chip_gen: v7x
topology: tpu7x:2x2x1
jax: 0.10.0
libtpu: 0.0.40
codegen_flags: <defaults>
</compile_context>

<pallas_src>
import functools

import jax
import jax.numpy as jnp
from jax.experimental import pallas as pl
from jax.experimental.pallas import tpu as pltpu


def _fc2_kernel(x_ref, w_ref, b_ref, o_ref):
    # x_ref: (in_f, BN) lane-dense tile of x^T
    # w_ref: (out_f, in_f) resident weight
    # b_ref: (out_f, 1) resident bias
    # o_ref: (out_f, BN) lane-dense tile of y^T
    y = jnp.dot(w_ref[...], x_ref[...], preferred_element_type=jnp.float32)
    o_ref[...] = (y + b_ref[...]).astype(o_ref.dtype)


def _round_up(a, b):
    return ((a + b - 1) // b) * b


@functools.partial(jax.jit, static_argnames=("block_n",))
def fc2_forward(x, weight, bias, *, block_n=512):
    """F.linear: x (N, 10) @ weight.T (10, 12) + bias (12,) -> (N, 12)."""
    n, in_f = x.shape
    out_f, _ = weight.shape

    # Lane-dense layout: N goes on the last (lane) dim, padded to a multiple
    # of 128; tile size capped at block_n columns.
    bn = min(block_n, _round_up(n, 128))
    n_pad = _round_up(n, bn)

    x_t = x.T                                        # (in_f, N)
    if n_pad != n:
        x_t = jnp.pad(x_t, ((0, 0), (0, n_pad - n)))  # zero-pad extra columns
    b2d = bias.reshape(out_f, 1)

    grid = (n_pad // bn,)
    itemsize = jnp.dtype(x.dtype).itemsize
    flops = 2 * n_pad * in_f * out_f
    bytes_accessed = (x_t.size + weight.size + b2d.size + out_f * n_pad) * itemsize

    y_t = pl.pallas_call(
        _fc2_kernel,
        out_shape=jax.ShapeDtypeStruct((out_f, n_pad), x.dtype),
        grid=grid,
        in_specs=[
            pl.BlockSpec((in_f, bn), lambda i: (0, i)),     # x^T tile (lane-dense)
            pl.BlockSpec((out_f, in_f), lambda i: (0, 0)),  # weight, resident
            pl.BlockSpec((out_f, 1), lambda i: (0, 0)),     # bias, resident
        ],
        out_specs=pl.BlockSpec((out_f, bn), lambda i: (0, i)),
        compiler_params=pltpu.CompilerParams(
            dimension_semantics=("parallel",),
        ),
        cost_estimate=pl.CostEstimate(
            flops=flops, transcendentals=0, bytes_accessed=bytes_accessed),
    )(x_t, weight, b2d)

    # Drop padded columns, return in PyTorch's (N, out_features) layout.
    return y_t[:, :n].T


if __name__ == "__main__":
    key = jax.random.PRNGKey(0)
    kx, kw, kb = jax.random.split(key, 3)

    batch = 8
    in_features, out_features = 10, 12

    # Deterministic init mimicking nn.Linear's uniform(-1/sqrt(in), 1/sqrt(in)).
    bound = 1.0 / (in_features ** 0.5)
    weight = jax.random.uniform(kw, (out_features, in_features),
                                minval=-bound, maxval=bound, dtype=jnp.float32)
    bias = jax.random.uniform(kb, (out_features,),
                              minval=-bound, maxval=bound, dtype=jnp.float32)
    x = jax.random.normal(kx, (batch, in_features), dtype=jnp.float32)

    out = fc2_forward(x, weight, bias)
    out = jax.block_until_ready(out)

    # Reference check against plain JAX (F.linear semantics).
    ref = x @ weight.T + bias
    assert out.shape == (batch, out_features)
    assert jnp.allclose(out, ref, atol=1e-5, rtol=1e-5), "mismatch vs reference"

    print("KERNEL_OK")
</pallas_src>

<mosaic_0001>
module attributes {stable_mosaic.version = 11 : i64} {
  func.func @_fc2_kernel(%arg0: i32, %arg1: memref<10x128xf32, #tpu.memory_space<vmem>>, %arg2: memref<12x10xf32, #tpu.memory_space<vmem>>, %arg3: memref<12x1xf32, #tpu.memory_space<vmem>>, %arg4: memref<12x128xf32, #tpu.memory_space<vmem>>) attributes {dimension_semantics = [#tpu.dimension_semantics<parallel>], iteration_bounds = array<i64: 1>, scalar_prefetch = 0 : i64, scratch_operands = 0 : i64, tpu.core_type = #tpu.core_type<tc>, window_params = [{transform_indices = @transform_0, window_bounds = array<i64: 10, 128>}, {pipeline_mode = #tpu.pipeline_mode<synchronous>, transform_indices = @transform_1, window_bounds = array<i64: 12, 10>}, {pipeline_mode = #tpu.pipeline_mode<synchronous>, transform_indices = @transform_2, window_bounds = array<i64: 12, 1>}, {transform_indices = @transform_3, window_bounds = array<i64: 12, 128>}]} {
    %c0 = arith.constant 0 : index
    %c0_0 = arith.constant 0 : index
    %0 = vector.load %arg2[%c0, %c0_0] : memref<12x10xf32, #tpu.memory_space<vmem>>, vector<12x10xf32>
    %c0_1 = arith.constant 0 : index
    %c0_2 = arith.constant 0 : index
    %1 = vector.load %arg1[%c0_1, %c0_2] : memref<10x128xf32, #tpu.memory_space<vmem>>, vector<10x128xf32>
    %cst = arith.constant dense<0.000000e+00> : vector<12x128xf32>
    %2 = tpu.matmul %0, %1, %cst {dimension_numbers = #tpu.dot_dimension_numbers<[1], [0], [0], [1], [0, 0, 1, 1], [], []>} : vector<12x10xf32>, vector<10x128xf32>, vector<12x128xf32> -> vector<12x128xf32>
    %c0_3 = arith.constant 0 : index
    %c0_4 = arith.constant 0 : index
    %3 = vector.load %arg3[%c0_3, %c0_4] : memref<12x1xf32, #tpu.memory_space<vmem>>, vector<12x1xf32>
    %4 = vector.broadcast %3 : vector<12x1xf32> to vector<12x128xf32>
    %5 = arith.addf %2, %4 : vector<12x128xf32>
    %c0_5 = arith.constant 0 : index
    %c0_6 = arith.constant 0 : index
    %6 = vector.load %arg4[%c0_5, %c0_6] : memref<12x128xf32, #tpu.memory_space<vmem>>, vector<12x128xf32>
    tpu.vector_store %arg4[%c0_5, %c0_6], %5 {strides = array<i32>} : memref<12x128xf32, #tpu.memory_space<vmem>>, vector<12x128xf32>,
    return
  }
  func.func @transform_0(%arg0: i32) -> (i32, i32) {
    %c0_i32 = arith.constant 0 : i32
    %c0_i32_0 = arith.constant 0 : i32
    return %c0_i32, %arg0 : i32, i32
  }
  func.func @transform_1(%arg0: i32) -> (i32, i32) {
    %c0_i32 = arith.constant 0 : i32
    %c0_i32_0 = arith.constant 0 : i32
    %c0_i32_1 = arith.constant 0 : i32
    return %c0_i32, %c0_i32_0 : i32, i32
  }
  func.func @transform_2(%arg0: i32) -> (i32, i32) {
    %c0_i32 = arith.constant 0 : i32
    %c0_i32_0 = arith.constant 0 : i32
    %c0_i32_1 = arith.constant 0 : i32
    return %c0_i32, %c0_i32_0 : i32, i32
  }
  func.func @transform_3(%arg0: i32) -> (i32, i32) {
    %c0_i32 = arith.constant 0 : i32
    %c0_i32_0 = arith.constant 0 : i32
    return %c0_i32, %arg0 : i32, i32
  }
}

</mosaic_0001>

<llo_original>
// kernel: fc2_forward.1
$region0: #{fc2_forward.1}
  #allocation0 [shape = 'u32[]', space=smem, size = 0x4, offset = 0x4, fixed_abs, tag = 'smem constant byte address 0x4 - core index']
  #allocation1 [shape = 'u32[144,128]{1,0:T(1,128)}', space=vmem, size = 0x12000, scoped, tag = 'internal scratch']
  %s0 = inlined_call_operand.vmem [shape: f32[10,128], index: 0, kind: input, shape index: {}]
  %s1 = inlined_call_operand.vmem [shape: f32[12,10], index: 1, kind: input, shape index: {}]
  %s2 = inlined_call_operand.vmem [shape: f32[12,1], index: 2, kind: input, shape index: {}]
  %s3 = inlined_call_operand.vmem [shape: f32[12,128], index: 3, kind: output, shape index: {}]
  %s4 = sld [smem:[#allocation0]]
  $region22: #{fc2_forward.1} parent=0
    _
  %s6 = ssub.s32 1, %s4
  %s7 = scalar_select 0, %s6, %s4
  // Predicated region
  $region2: #{fc2_forward.1} parent=0 // pred_check
    _
  $region3: #{fc2_forward.1} parent=0 // pred_check_branch
    %9 = sbr.rel (0) target = $region5
  $region4: #{fc2_forward.1} parent=0 // pred_region
    _
  $region5: #{fc2_forward.1} parent=0 // pred_fallthru
    _
  // Predicated region
  $region6: #{fc2_forward.1} parent=0 // pred_check
    _
  $region7: #{fc2_forward.1} parent=0 // pred_check_branch
    %11 = sbr.rel (0) target = $region9
  $region8: #{fc2_forward.1} parent=0 // pred_region
    _
  $region9: #{fc2_forward.1} parent=0 // pred_fallthru
    _
  // Predicated region
  $region10: #{fc2_forward.1} parent=0 // pred_check
    _
  $region11: #{fc2_forward.1} parent=0 // pred_check_branch
    %13 = sbr.rel (0) target = $region13
  $region12: #{fc2_forward.1} parent=0 // pred_region
    _
  $region13: #{fc2_forward.1} parent=0 // pred_fallthru
    _
  %v14 = vld [vmem:[%s1] sm:$0xff]
  %v15 = vld [vmem:[%s1 + $0x8] sm:$0xf]
  %v16 = vld [vmem:[%s0] sm:$0xff]
  %v17 = vld [vmem:[%s0 + $0x8] sm:$0x3]
  %v18 = vld [vmem:[%s2] sm:$0xff]
  %v19 = vld [vmem:[%s2 + $0x8] sm:$0xf]
  %21 = vset.pattern.permute.xlu0 0
  %22 = vperm.xlu0 %21, %v18
  %v23 = vpop.permute.xlu0 %22
  %26 = vset.pattern.permute.xlu0 0
  %27 = vperm.xlu0 %26, %v19
  %v28 = vpop.permute.xlu0 %27
  %vm30 = vcmask 80896
  %v32 = vsel %vm30, %v14, 0
  %v35 = vsel %vm30, %v15, 0
  %vm37 = vcmask 1041408
  %v39 = vsel %vm37, %v17, 0
  %41 = vmatprep.subr.mxu0 0.0
  %42 = vmatpush1.msra.mxu0 %v16
  %43 = vmatprep.subr.mxu0 0.0
  %44 = vmatpush1.msra.mxu0 %v39
  %45 = vmatprep.subr.mxu0 0.0
  %46 = vmatpush1.msra.mxu0 0.0
  %47 = vmatprep.subr.mxu0 0.0
  %48 = vmatpush1.msra.mxu0 0.0
  %49 = vmatprep.subr.mxu0 0.0
  %50 = vmatpush1.msra.mxu0 0.0
  %51 = vmatprep.subr.mxu0 0.0
  %52 = vmatpush1.msra.mxu0 0.0
  %53 = vmatprep.subr.mxu0 0.0
  %54 = vmatpush1.msra.mxu0 0.0
  %55 = vmatprep.subr.mxu0 0.0
  %56 = vmatpush1.msra.mxu0 0.0
  %57 = vmatprep.subr.mxu0 0.0
  %58 = vmatpush1.msra.mxu0 0.0
  %59 = vmatprep.subr.mxu0 0.0
  %60 = vmatpush1.msra.mxu0 0.0
  %61 = vmatprep.subr.mxu0 0.0
  %62 = vmatpush1.msra.mxu0 0.0
  %63 = vmatprep.subr.mxu0 0.0
  %64 = vmatpush1.msra.mxu0 0.0
  %65 = vmatprep.subr.mxu0 0.0
  %66 = vmatpush1.msra.mxu0 0.0
  %67 = vmatprep.subr.mxu0 0.0
  %68 = vmatpush1.msra.mxu0 0.0
  %69 = vmatprep.subr.mxu0 0.0
  %70 = vmatpush1.msra.mxu0 0.0
  %71 = vmatprep.subr.mxu0 0.0
  %72 = vmatpush1.msra.mxu0 0.0
  %73 = vmatprep.subr.mxu0 0.0
  %74 = vmatpush1.msra.mxu0 0.0
  %75 = vmatprep.subr.mxu0 0.0
  %76 = vmatpush1.msra.mxu0 0.0
  %77 = vmatprep.subr.mxu0 0.0
  %78 = vmatpush1.msra.mxu0 0.0
  %79 = vmatprep.subr.mxu0 0.0
  %80 = vmatpush1.msra.mxu0 0.0
  %81 = vmatprep.subr.mxu0 0.0
  %82 = vmatpush1.msra.mxu0 0.0
  %83 = vmatprep.subr.mxu0 0.0
  %84 = vmatpush1.msra.mxu0 0.0
  %85 = vmatprep.subr.mxu0 0.0
  %86 = vmatpush1.msra.mxu0 0.0
  %87 = vmatprep.subr.mxu0 0.0
  %88 = vmatpush1.msra.mxu0 0.0
  %89 = vmatprep.subr.mxu0 0.0
  %90 = vmatpush1.msra.mxu0 0.0
  %91 = vmatprep.subr.mxu0 0.0
  %92 = vmatpush1.msra.mxu0 0.0
  %93 = vmatprep.subr.mxu0 0.0
  %94 = vmatpush1.msra.mxu0 0.0
  %95 = vmatprep.subr.mxu0 0.0
  %96 = vmatpush1.msra.mxu0 0.0
  %97 = vmatprep.subr.mxu0 0.0
  %98 = vmatpush1.msra.mxu0 0.0
  %99 = vmatprep.subr.mxu0 0.0
  %100 = vmatpush1.msra.mxu0 0.0
  %101 = vmatprep.subr.mxu0 0.0
  %102 = vmatpush1.msra.mxu0 0.0
  %103 = vmatprep.subr.mxu0 0.0
  %104 = vmatpush1.msra.mxu0 0.0
  %105 = vmatprep.mubr.f32.mxu0 0.0
  %106 = vmatmul.mubr.f32.gmra.mrb[0].mxu0 %v32
  %v107 = vpop.f32.mrb[0].mxu0
  %v108 = vadd.f32 %v23, %v107
  %v109 = vpop.f32.mrb[0].mxu0
  %110 = vmatprep.mubr.f32.mxu0 0.0
  %111 = vmatmul.mubr.f32.gmra.mrb[0].mxu0 %v35
  %v112 = vpop.f32.mrb[0].mxu0
  %v113 = vadd.f32 %v28, %v112
  %v114 = vpop.f32.mrb[0].mxu0
  %115 = vdwg.mxu0
  %116 = vst [vmem:[%s3] sm:$0xff] %v108
  %117 = vst [vmem:[%s3 + $0x8] sm:$0xf] %v113
  // Predicated region
  $region14: #{fc2_forward.1} parent=0 // pred_check
    _
  $region15: #{fc2_forward.1} parent=0 // pred_check_branch
    %119 = sbr.rel (0) target = $region17
  $region16: #{fc2_forward.1} parent=0 // pred_region
    _
  $region17: #{fc2_forward.1} parent=0 // pred_fallthru
    _
  // Predicated region
  $region18: #{fc2_forward.1} parent=0 // pred_check
    _
  $region19: #{fc2_forward.1} parent=0 // pred_check_branch
    %121 = sbr.rel (0) target = $region21
  $region20: #{fc2_forward.1} parent=0 // pred_region
    _
  $region21: #{fc2_forward.1} parent=0 // pred_fallthru
    _

</llo_original>
